<compile_context>
chip_gen: v5e
topology: v5e:2x2
jax: 0.10.0
libtpu: 0.0.40
codegen_flags: <defaults>
</compile_context>

<pallas_src>
import functools

import jax
import jax.numpy as jnp
from jax.experimental import pallas as pl
from jax.experimental.pallas import tpu as pltpu

LANES = 128
CHUNK_ROWS = 512  # 256 KiB f32 per chunk-sized intermediate; multiple of 32.


def _round_up(x: int, m: int) -> int:
    return ((x + m - 1) // m) * m


def _sublane_multiple(dtype) -> int:
    # f32 -> 8, bf16 -> 16, int8 -> 32 (min second-to-last block dim).
    itemsize = jnp.dtype(dtype).itemsize
    return max(8, 32 // max(itemsize, 1))


def _max_tile_rows_for_device() -> int:
    """Per-generation tile cap (rows of 128 lanes)."""
    try:
        kind = jax.devices()[0].device_kind.lower()
    except Exception:  # pragma: no cover - defensive
        kind = ""
    if "v6" in kind or "v7" in kind:
        return 8192  # 4 MiB f32 / input block; 16 MiB double-buffered.
    return 4096      # v5e & older: stay well inside the 16 MiB scoped default.


def _logloss_kernel(y_ref, p_ref, partial_ref, *, tile_rows, chunk_rows,
                    rows_valid, needs_mask, hard_labels):
    """One (tile_rows, 128) tile -> one (1, 8, 128) partial-sum output block."""
    num_chunks = tile_rows // chunk_rows
    tile_row0 = pl.program_id(0) * tile_rows

    def chunk_partial(r0):
        y = y_ref[pl.ds(r0, chunk_rows), :].astype(jnp.float32)
        p = p_ref[pl.ds(r0, chunk_rows), :].astype(jnp.float32)
        if hard_labels:
            # Single transcendental per element; only valid for y in {0, 1}.
            term = jnp.log(jnp.where(y >= 0.5, p, 1.0 - p))
        else:
            log_p = jnp.log(p)
            log_1mp = jnp.log1p(-p)
            # == y*log(p) + (1-y)*log(1-p) with one fewer mul/sub.
            term = log_1mp + y * (log_p - log_1mp)
        if needs_mask:
            # Only the last (ragged) tile has invalid rows; the DMA leaves
            # garbage there, so select exact zeros before accumulating.
            row = tile_row0 + r0 + jax.lax.broadcasted_iota(
                jnp.int32, (chunk_rows, LANES), 0)
            term = jnp.where(row < rows_valid, term, 0.0)
        # (chunk_rows, 128) -> (8, 128): elementwise adds of whole vreg tiles,
        # no cross-lane XLU work.
        return jnp.sum(term.reshape(chunk_rows // 8, 8, LANES), axis=0)

    def body(c, acc):
        r0 = pl.multiple_of(c * chunk_rows, chunk_rows)
        return acc + chunk_partial(r0)

    acc = jax.lax.fori_loop(0, num_chunks, body,
                            jnp.zeros((8, LANES), jnp.float32), unroll=True)
    partial_ref[0] = acc


def log_loss(y_ground: jax.Array, probabilities: jax.Array,
             *, hard_labels: bool = False) -> jax.Array:
    """Pallas TPU implementation of LogLoss.forward.

    y_ground, probabilities: arrays of identical shape (N,). Labels may be a
    narrower dtype (bf16 / int8); they are upcast inside the kernel.
    hard_labels=True enables the single-log fast path (y must be in {0, 1}).
    Returns a float32 scalar.
    """
    assert y_ground.shape == probabilities.shape, (
        f"SHAPE MISMATCH - y_ground.shape={y_ground.shape}, "
        f"probabilities.shape={probabilities.shape}"
    )
    y_flat = y_ground.reshape(-1)
    p_flat = probabilities.reshape(-1)
    n = y_flat.shape[0]

    rows = n // LANES               # full 128-wide rows
    tail = n - rows * LANES         # < 128 leftover elements

    total = jnp.float32(0.0)

    if rows > 0:
        if tail:
            # TODO(synk): the aligned-prefix slice copies ~N elems per input
            # when N % 128 != 0; keep N a multiple of 128 upstream to make the
            # whole pipeline copy-free.
            y_main = y_flat[: rows * LANES]
            p_main = p_flat[: rows * LANES]
        else:
            y_main, p_main = y_flat, p_flat
        # Free view: contiguous 1-D -> (rows, 128), no data movement.
        y2 = y_main.reshape(rows, LANES)
        p2 = p_main.reshape(rows, LANES)

        mult = max(_sublane_multiple(y2.dtype), _sublane_multiple(p2.dtype))
        chunk_rows = min(CHUNK_ROWS, _round_up(rows, mult))
        tile_rows = min(_max_tile_rows_for_device(),
                        _round_up(rows, chunk_rows))
        num_tiles = pl.cdiv(rows, tile_rows)
        needs_mask = (rows % tile_rows) != 0

        kernel = functools.partial(
            _logloss_kernel, tile_rows=tile_rows, chunk_rows=chunk_rows,
            rows_valid=rows, needs_mask=needs_mask, hard_labels=hard_labels)

        in_block_bytes = tile_rows * LANES * (
            y2.dtype.itemsize + p2.dtype.itemsize)
        vmem_limit = min(2 * in_block_bytes + (8 << 20), 64 << 20)

        elems = rows * LANES
        cost = pl.CostEstimate(
            flops=6 * elems,
            transcendentals=(1 if hard_labels else 2) * elems,
            bytes_accessed=y2.size * y2.dtype.itemsize
            + p2.size * p2.dtype.itemsize + num_tiles * 8 * LANES * 4)

        partials = pl.pallas_call(
            kernel,
            out_shape=jax.ShapeDtypeStruct((num_tiles, 8, LANES), jnp.float32),
            grid_spec=pltpu.PrefetchScalarGridSpec(
                num_scalar_prefetch=0,
                grid=(num_tiles,),
                in_specs=[
                    pl.BlockSpec((tile_rows, LANES), lambda i: (i, 0)),
                    pl.BlockSpec((tile_rows, LANES), lambda i: (i, 0)),
                ],
                out_specs=pl.BlockSpec((1, 8, LANES), lambda i: (i, 0, 0)),
            ),
            compiler_params=pltpu.CompilerParams(
                # Independent grid steps -> shard across TensorCores on v7x.
                dimension_semantics=("parallel",),
                vmem_limit_bytes=vmem_limit,
            ),
            cost_estimate=cost,
        )(y2, p2)

        total = jnp.sum(partials)

    if tail:
        # Ragged tail (< 128 elements): trivial XLA epilogue, no padding.
        y_t = y_flat[rows * LANES:].astype(jnp.float32)
        p_t = p_flat[rows * LANES:].astype(jnp.float32)
        if hard_labels:
            t_term = jnp.log(jnp.where(y_t >= 0.5, p_t, 1.0 - p_t))
        else:
            lp = jnp.log(p_t)
            l1 = jnp.log1p(-p_t)
            t_term = l1 + y_t * (lp - l1)
        total = total + jnp.sum(t_term)

    return -(total / jnp.float32(n))


def log_loss_ref(y, p):
    y = y.astype(jnp.float32)
    p = p.astype(jnp.float32)
    return -jnp.mean(y * jnp.log(p) + (1.0 - y) * jnp.log(1.0 - p))


if __name__ == "__main__":
    key = jax.random.PRNGKey(0)
    k1, k2, k3, k4 = jax.random.split(key, 4)

    # Case 1: small, deliberately NOT a multiple of 128 -> exercises the
    # ragged-tile mask and the XLA tail epilogue.
    N = 1000
    y_ground = jax.random.bernoulli(k1, p=0.5, shape=(N,)).astype(jnp.float32)
    probabilities = jax.random.uniform(
        k2, (N,), dtype=jnp.float32, minval=0.01, maxval=0.99)

    loss = log_loss(y_ground, probabilities)
    jax.block_until_ready(loss)
    ref = log_loss_ref(y_ground, probabilities)
    assert jnp.allclose(loss, ref, rtol=1e-5, atol=1e-6), (loss, ref)

    # Case 1b: hard-label (single-log) fast path on the same data.
    loss_hard = log_loss(y_ground, probabilities, hard_labels=True)
    jax.block_until_ready(loss_hard)
    assert jnp.allclose(loss_hard, ref, rtol=1e-5, atol=1e-6), (loss_hard, ref)

    # Case 2: N a multiple of 128 (zero-copy path) with bf16 labels
    # (narrow-label HBM-traffic saving; kernel upcasts internally).
    N2 = 4096
    y2 = jax.random.bernoulli(k3, p=0.5, shape=(N2,)).astype(jnp.bfloat16)
    p2 = jax.random.uniform(k4, (N2,), dtype=jnp.float32, minval=0.01,
                            maxval=0.99)
    loss2 = log_loss(y2, p2)
    jax.block_until_ready(loss2)
    ref2 = log_loss_ref(y2, p2)
    assert jnp.allclose(loss2, ref2, rtol=1e-5, atol=1e-6), (loss2, ref2)

    print("KERNEL_OK")
</pallas_src>

<mosaic_0001>
module attributes {stable_mosaic.version = 11 : i64} {
  func.func @_logloss_kernel(%arg0: i32, %arg1: memref<8x128xf32, #tpu.memory_space<vmem>>, %arg2: memref<8x128xf32, #tpu.memory_space<vmem>>, %arg3: memref<1x8x128xf32, #tpu.memory_space<vmem>>) attributes {dimension_semantics = [#tpu.dimension_semantics<parallel>], iteration_bounds = array<i64: 1>, scalar_prefetch = 0 : i64, scratch_operands = 0 : i64, tpu.core_type = #tpu.core_type<tc>, window_params = [{transform_indices = @transform_0, window_bounds = array<i64: 8, 128>}, {transform_indices = @transform_1, window_bounds = array<i64: 8, 128>}, {transform_indices = @transform_2, window_bounds = array<i64: 1, 8, 128>}]} {
    %c8_i32 = arith.constant 8 : i32
    %0 = arith.muli %arg0, %c8_i32 : i32
    %cst = arith.constant 0.000000e+00 : f32
    %1 = vector.broadcast %cst : f32 to vector<8x128xf32>
    %c0_i32 = arith.constant 0 : i32
    %c8_i32_0 = arith.constant 8 : i32
    %2 = arith.muli %c0_i32, %c8_i32_0 : i32
    %3 = tpu.assume_multiple %2, 8 : i32
    %4 = arith.index_cast %3 : i32 to index
    %c0 = arith.constant 0 : index
    %5 = vector.load %arg1[%4, %c0] : memref<8x128xf32, #tpu.memory_space<vmem>>, vector<8x128xf32>
    %6 = arith.index_cast %3 : i32 to index
    %c0_1 = arith.constant 0 : index
    %7 = vector.load %arg2[%6, %c0_1] : memref<8x128xf32, #tpu.memory_space<vmem>>, vector<8x128xf32>
    %8 = math.log %7 : vector<8x128xf32>
    %cst_2 = arith.constant 0.000000e+00 : f32
    %9 = vector.broadcast %cst_2 : f32 to vector<8x128xf32>
    %10 = arith.subf %9, %7 : vector<8x128xf32>
    %11 = math.log1p %10 : vector<8x128xf32>
    %12 = arith.subf %8, %11 : vector<8x128xf32>
    %13 = arith.mulf %5, %12 : vector<8x128xf32>
    %14 = arith.addf %11, %13 : vector<8x128xf32>
    %15 = arith.addi %0, %3 : i32
    %16 = tpu.iota {dimensions = array<i32: 0>} : vector<8x128xi32>
    %17 = vector.broadcast %15 : i32 to vector<8x128xi32>
    %18 = arith.addi %17, %16 : vector<8x128xi32>
    %c7_i32 = arith.constant 7 : i32
    %19 = vector.broadcast %c7_i32 : i32 to vector<8x128xi32>
    %20 = arith.cmpi slt, %18, %19 : vector<8x128xi32>
    %cst_3 = arith.constant 0.000000e+00 : f32
    %21 = vector.broadcast %cst_3 : f32 to vector<8x128xf32>
    %22 = arith.select %20, %14, %21 : vector<8x128xi1>, vector<8x128xf32>
    %23 = vector.shape_cast %22 : vector<8x128xf32> to vector<1x8x128xf32>
    %cst_4 = arith.constant dense<0.000000e+00> : vector<8x128xf32>
    %24 = vector.multi_reduction <add>, %23, %cst_4 [0] : vector<1x8x128xf32> to vector<8x128xf32>
    %25 = arith.addf %1, %24 : vector<8x128xf32>
    %c1_i32 = arith.constant 1 : i32
    %c0_5 = arith.constant 0 : index
    %c0_6 = arith.constant 0 : index
    %c0_7 = arith.constant 0 : index
    %26 = vector.load %arg3[%c0_5, %c0_6, %c0_7] : memref<1x8x128xf32, #tpu.memory_space<vmem>>, vector<1x8x128xf32>
    %27 = vector.shape_cast %26 : vector<1x8x128xf32> to vector<8x128xf32>
    %28 = vector.shape_cast %25 : vector<8x128xf32> to vector<1x8x128xf32>
    tpu.vector_store %arg3[%c0_5, %c0_6, %c0_7], %28 {strides = array<i32>} : memref<1x8x128xf32, #tpu.memory_space<vmem>>, vector<1x8x128xf32>,
    return
  }
  func.func @transform_0(%arg0: i32) -> (i32, i32) {
    %c0_i32 = arith.constant 0 : i32
    %c0_i32_0 = arith.constant 0 : i32
    return %arg0, %c0_i32 : i32, i32
  }
  func.func @transform_1(%arg0: i32) -> (i32, i32) {
    %c0_i32 = arith.constant 0 : i32
    %c0_i32_0 = arith.constant 0 : i32
    return %arg0, %c0_i32 : i32, i32
  }
  func.func @transform_2(%arg0: i32) -> (i32, i32, i32) {
    %c0_i32 = arith.constant 0 : i32
    %c0_i32_0 = arith.constant 0 : i32
    %c0_i32_1 = arith.constant 0 : i32
    return %arg0, %c0_i32, %c0_i32_0 : i32, i32, i32
  }
}

</mosaic_0001>

<llo_original>
// kernel: tpu_custom_call.1
$region0: #{tpu_custom_call.1}
  #allocation0 [shape = 'u32[]', space=smem, size = 0x4, offset = 0x4, fixed_abs, tag = 'smem constant byte address 0x4 - core index']
  #allocation1 [shape = 'u32[72,128]{1,0:T(1,128)}', space=vmem, size = 0x9000, scoped, tag = 'internal scratch']
  %s0 = inlined_call_operand.hbm [shape: f32[7,128], index: 0, kind: input, shape index: {}]
  %s1 = inlined_call_operand.hbm [shape: f32[7,128], index: 1, kind: input, shape index: {}]
  %s2 = inlined_call_operand.hbm [shape: f32[1,8,128], index: 2, kind: output, shape index: {}]
  %s3 = sld [smem:[#allocation0]]
  $region26: #{tpu_custom_call.1} parent=0
    _
  %s5 = ssub.s32 1, %s3
  %s6 = scalar_select 0, %s5, %s3
  $region1: #{tpu_custom_call.1} parent=0
    #allocation2 [shape = 'u8[4096]{0}', space=vmem, size = 0x1000, scoped, tag = 'input window, operand 0, single buffered']
    #allocation3 [shape = 's32[1]{0}', space=sflag, size = 0x4, scoped, tag = 'scoped memory for tpu_custom_call.1']
    #allocation4 [shape = 's32[1]{0}', space=sflag, size = 0x4, scoped, tag = 'scoped memory for tpu_custom_call.1']
    #allocation5 [shape = 'u8[4096]{0}', space=vmem, size = 0x1000, scoped, tag = 'input window, operand 1, single buffered']
    #allocation6 [shape = 's32[1]{0}', space=sflag, size = 0x4, scoped, tag = 'scoped memory for tpu_custom_call.1']
    #allocation7 [shape = 'u8[4096]{0}', space=vmem, size = 0x1000, scoped, tag = 'output window, operand 0, single buffered']
    %7 = vsyncpa [#allocation3], 0
    %8 = vsyncpa [#allocation6], 0
    %9 = vsyncpa [#allocation4], 0
    // Predicated region
    $region2: #{tpu_custom_call.1} parent=1 // pred_check
      _
    $region3: #{tpu_custom_call.1} parent=1 // pred_check_branch
      %11 = sbr.rel (0) target = $region5
    $region4: #{tpu_custom_call.1} parent=1 // pred_region
      %13 = vsyncadd [#allocation3], 0
      %s15 = sshll.u32 %s0, 4
      %s16 = int_to_ptr.hbm [resolvable:$true] %s15
      %s17 = sshll.u32 [#allocation2], 4
      %s18 = int_to_ptr.vmem [resolvable:$true] %s17
      %20 = dma.hbm_to_vmem [thread:$0]  %s16, 128, %s18, [#allocation3]
    $region5: #{tpu_custom_call.1} parent=1 // pred_fallthru
      _
    // Predicated region
    $region6: #{tpu_custom_call.1} parent=1 // pred_check
      _
    $region7: #{tpu_custom_call.1} parent=1 // pred_check_branch
      %22 = sbr.rel (0) target = $region9
    $region8: #{tpu_custom_call.1} parent=1 // pred_region
      %24 = vsyncadd [#allocation6], 0
      %s26 = sshll.u32 %s1, 4
      %s27 = int_to_ptr.hbm [resolvable:$true] %s26
      %s28 = sshll.u32 [#allocation5], 4
      %s29 = int_to_ptr.vmem [resolvable:$true] %s28
      %31 = dma.hbm_to_vmem [thread:$0]  %s27, 128, %s29, [#allocation6]
    $region9: #{tpu_custom_call.1} parent=1 // pred_fallthru
      _
    // Predicated region
    $region10: #{tpu_custom_call.1} parent=1 // pred_check
      _
    $region11: #{tpu_custom_call.1} parent=1 // pred_check_branch
      %33 = sbr.rel (0) target = $region13
    $region12: #{tpu_custom_call.1} parent=1 // pred_region
      %35 = dma.done [#allocation3], 128
    $region13: #{tpu_custom_call.1} parent=1 // pred_fallthru
      _
    // Predicated region
    $region14: #{tpu_custom_call.1} parent=1 // pred_check
      _
    $region15: #{tpu_custom_call.1} parent=1 // pred_check_branch
      %37 = sbr.rel (0) target = $region17
    $region16: #{tpu_custom_call.1} parent=1 // pred_region
      %39 = dma.done [#allocation6], 128
    $region17: #{tpu_custom_call.1} parent=1 // pred_fallthru
      _
    %s40 = smul.u32 0, 8
    %v41 = vld [vmem:[#allocation2] sm:$0xff]
    %v42 = vld [vmem:[#allocation5] sm:$0xff]
    %v43 = vlog2.pop %v42
    %v44 = vmul.f32 %v43, 0.6931472
    %v45 = vsub.f32 0.0, %v42
    %v46 = vadd.f32 %v45, 1.0
    %v47 = vlog2.pop %v46
    %v48 = vmul.f32 %v47, 0.6931472
    %v49 = vmul.f32 -0.5, %v45
    %v50 = vadd.f32 %v49, 1.0
    %v51 = vmul.f32 %v50, %v45
    %v52 = vand.u32 2147483647, %v45
    %vm53 = vcmp.lt.f32.partialorder %v52, 0.0004427343
    %v54 = vsel %vm53, %v51, %v48
    %v55 = vsub.f32 %v44, %v54
    %v56 = vmul.f32 %v41, %v55
    %v57 = vadd.f32 %v54, %v56
    %s58 = sadd.s32 %s40, 0
    %v59 = vlaneseq
    %v60 = vshrl.u32 %v59, 7
    %v61 = vstv %s58
    %v62 = vadd.s32 %v61, %v60
    %vm63 = vcmp.lt.s32.totalorder %v62, 7
    %v64 = vsel %vm63, %v57, 0.0
    %v65 = vadd.f32 %v64, 0.0
    %v66 = vadd.f32 %v65, 0.0
    %67 = vst [vmem:[#allocation7] sm:$0xff] %v66
    // Predicated region
    $region18: #{tpu_custom_call.1} parent=1 // pred_check
      _
    $region19: #{tpu_custom_call.1} parent=1 // pred_check_branch
      %69 = sbr.rel (0) target = $region21
    $region20: #{tpu_custom_call.1} parent=1 // pred_region
      %71 = vsyncadd [#allocation4], 0
      %s73 = sshll.u32 [#allocation7], 4
      %s74 = int_to_ptr.vmem [resolvable:$true] %s73
      %s75 = sshll.u32 %s2, 4
      %s76 = int_to_ptr.hbm [resolvable:$true] %s75
      %78 = dma.vmem_to_hbm [thread:$0]  %s74, 128, %s76, [#allocation4]
    $region21: #{tpu_custom_call.1} parent=1 // pred_fallthru
      _
    // Predicated region
    $region22: #{tpu_custom_call.1} parent=1 // pred_check
      _
    $region23: #{tpu_custom_call.1} parent=1 // pred_check_branch
      %80 = sbr.rel (0) target = $region25
    $region24: #{tpu_custom_call.1} parent=1 // pred_region
      %82 = dma.done [#allocation4], 128
    $region25: #{tpu_custom_call.1} parent=1 // pred_fallthru
      _
    %83 = vsyncpa [#allocation3], 1
    %84 = vsyncpa [#allocation6], 1
    %85 = vsyncpa [#allocation4], 1

</llo_original>
